<compile_context>
chip_gen: v7x
topology: tpu7x:2x2x1
jax: 0.10.0
libtpu: 0.0.40
codegen_flags: <defaults>
</compile_context>

<pallas_src>
import jax
import jax.numpy as jnp
from jax.experimental import pallas as pl
from jax.experimental.pallas import tpu as pltpu

_LANE = 128
_SUBLANE = 8


def _round_up(x, m):
    return ((x + m - 1) // m) * m


def _pack_params(flt, c0, filter_size):
    """Pack the flat per-instance filter vector into one 2-D-sliceable tensor.

    Per layer l (static column offset `col`):
      normal layer : rows [0:fn) cols [col, col+c)  = W_l (fn, c)
                     rows [0:fn) col   col+c        = b_l (fn, 1)
      final fn==1  : rows [0:c)  col   col          = W_l^T (c, 1)   (VPU+XLU path)
                     row  0      col   col+1        = b_l scalar
    Returns (params, col_plan, max_rows, total_cols).
    """
    num_inst = flt.shape[0]
    fns = tuple(filter_size)
    n_layers = len(fns)
    max_rows = max(fns)
    pieces, col_plan = [], []
    off, col, c = 0, 0, c0
    for l, fn in enumerate(fns):
        w = flt[:, off:off + c * fn].reshape(num_inst, fn, c)
        off += c * fn
        b = flt[:, off:off + fn].reshape(num_inst, fn, 1)
        off += fn
        is_reduce = (l == n_layers - 1) and (fn == 1) and (n_layers > 1)
        if is_reduce:
            piece = jnp.zeros((num_inst, max_rows, 2), jnp.float32)
            piece = piece.at[:, :c, 0:1].set(jnp.transpose(w, (0, 2, 1)))
            piece = piece.at[:, :1, 1:2].set(b)
            width = 2
        else:
            piece = jnp.zeros((num_inst, max_rows, c + 1), jnp.float32)
            piece = piece.at[:, :fn, :c].set(w)
            piece = piece.at[:, :fn, c:c + 1].set(b)
            width = c + 1
        pieces.append(piece)
        col_plan.append((col, is_reduce))
        col += width
        c = fn
    params = jnp.concatenate(pieces, axis=2)   # (num_inst, max_rows, total_cols)
    return params, tuple(col_plan), max_rows, col


def _make_kernel(c0, filter_fns, col_plan):
    """Kernel factory: points block (inst, C, N), packed-params block, output block."""
    n_layers = len(filter_fns)
    fn_last = filter_fns[-1]

    def kernel(x_ref, p_ref, o_ref):
        # x_ref: (inst_tile, c0, tile_n)           lane-dense along N
        # p_ref: (inst_tile, max_rows, total_cols) packed per-instance weights+biases
        # o_ref: (inst_tile, tile_n)               if fn_last == 1 (dense 2-D store)
        #        (inst_tile, fn_last, tile_n)      otherwise
        h = x_ref[...].astype(jnp.float32)
        c = c0
        for l, fn in enumerate(filter_fns):
            col, is_reduce = col_plan[l]
            if is_reduce:
                # Final 1-channel layer: VPU multiply + sublane reduction instead of an
                # M=1 MXU matmul; weight already stored transposed as (c, 1).
                wt = p_ref[:, 0:c, col:col + 1].astype(jnp.float32)           # (it, c, 1)
                b = p_ref[:, 0:1, col + 1:col + 2].astype(jnp.float32)        # (it, 1, 1)
                h = jnp.sum(wt * h, axis=1) + b[:, 0, :]                      # (it, tile_n)
            else:
                w = p_ref[:, 0:fn, col:col + c].astype(jnp.float32)           # (it, fn, c)
                b = p_ref[:, 0:fn, col + c:col + c + 1].astype(jnp.float32)   # (it, fn, 1)
                # Batched channel contraction: (it,fn,c) x (it,c,n) -> (it,fn,n);
                # N stays on the lane axis, the contraction is over sublanes of h.
                h = jnp.einsum("jfc,jcn->jfn", w, h,
                               preferred_element_type=jnp.float32) + b
            if l < n_layers - 1:                    # ReLU between layers only
                h = jnp.maximum(h, 0.0)
            c = fn
        if fn_last == 1 and h.ndim == 3:            # single-layer fn==1 corner case
            h = h[:, 0, :]
        o_ref[...] = jax.nn.sigmoid(h).astype(o_ref.dtype)

    return kernel


def _block_vmem_bytes(inst_tile, c0, tile_n, max_rows, total_cols, fn_last):
    """Padded (sublane x lane) VMEM bytes for one set of blocks (f32)."""
    lane_n = _round_up(tile_n, _LANE)
    x_b = inst_tile * _round_up(c0, _SUBLANE) * lane_n * 4
    p_b = inst_tile * _round_up(max_rows, _SUBLANE) * _round_up(total_cols, _LANE) * 4
    if fn_last == 1:
        o_b = _round_up(inst_tile, _SUBLANE) * lane_n * 4
    else:
        o_b = inst_tile * _round_up(fn_last, _SUBLANE) * lane_n * 4
    return x_b + p_b + o_b


def dynamic_filter_pallas(pts_cn, params, filter_fns, col_plan, max_rows, total_cols):
    """pts_cn: (num_inst, C0, N) f32 (lane-dense N); params: (num_inst, max_rows, total_cols)."""
    num_inst, c0, n = pts_cn.shape
    fn_last = filter_fns[-1]

    # ---- instance tile ------------------------------------------------------
    # Keep the fn_last==1 dense 2-D output block sublane-legal: either the full
    # instance extent or a multiple of 8.
    inst_tile = num_inst if num_inst <= 8 else 8

    # ---- lane tile ----------------------------------------------------------
    # Multiple of 128 (or the full extent when N < 128).  Cap it to bound vreg
    # pressure of the batched intermediates (smaller cap when more instances are
    # batched per step).
    lane_cap = 2048 if inst_tile <= 4 else 1024
    if n <= _LANE:
        tile_n = n
    else:
        tile_n = max(_LANE, min(lane_cap, _LANE * (n // _LANE)))

    # Conservative VMEM budget using *padded* block sizes (double-buffered); safe
    # for v7x's 64 MiB physical / 32 MiB default scoped VMEM as well as v5e/v6e.
    vmem_budget = 24 << 20
    while (tile_n > _LANE and
           2 * _block_vmem_bytes(inst_tile, c0, tile_n, max_rows, total_cols,
                                 fn_last) > vmem_budget):
        tile_n = max(_LANE, _LANE * ((tile_n // 2) // _LANE))

    grid_i = pl.cdiv(num_inst, inst_tile)
    grid_n = pl.cdiv(n, tile_n)

    # v7x has two TensorCores: keep >= 2 parallel grid steps when the problem allows,
    # preferring an N split (keeps all blocks sublane/lane legal).
    if grid_i * grid_n == 1 and n >= 2 * _LANE:
        tile_n = _LANE * pl.cdiv(pl.cdiv(n, 2), _LANE)
        grid_n = pl.cdiv(n, tile_n)

    grid = (grid_i, grid_n)

    vmem_need = 2 * _block_vmem_bytes(inst_tile, c0, tile_n, max_rows, total_cols, fn_last)
    vmem_limit = int(min(48 << 20, max(16 << 20, 4 * vmem_need)))

    # ---- output layout ------------------------------------------------------
    if fn_last == 1:
        out_shape = (num_inst, n)
        out_spec = pl.BlockSpec((inst_tile, tile_n), lambda i, t: (i, t))
    else:
        out_shape = (num_inst, fn_last, n)
        out_spec = pl.BlockSpec((inst_tile, fn_last, tile_n), lambda i, t: (i, 0, t))

    cs = (c0,) + tuple(filter_fns[:-1])
    flops = 2 * num_inst * n * sum(c * f for c, f in zip(cs, filter_fns))
    bytes_accessed = 4 * (pts_cn.size + params.size + num_inst * fn_last * n)

    out = pl.pallas_call(
        _make_kernel(c0, tuple(filter_fns), col_plan),
        grid=grid,
        in_specs=[
            pl.BlockSpec((inst_tile, c0, tile_n), lambda i, t: (i, 0, t)),
            pl.BlockSpec((inst_tile, max_rows, total_cols), lambda i, t: (i, 0, 0)),
        ],
        out_specs=out_spec,
        out_shape=jax.ShapeDtypeStruct(out_shape, jnp.float32),
        compiler_params=pltpu.CompilerParams(
            dimension_semantics=("parallel", "parallel"),
            vmem_limit_bytes=vmem_limit),
        cost_estimate=pl.CostEstimate(
            flops=int(flops),
            transcendentals=int(num_inst * fn_last * n),
            bytes_accessed=int(bytes_accessed)),
    )(pts_cn, params)

    if fn_last == 1:
        out = out[:, None, :]          # -> (num_inst, 1, n) for uniform post-processing
    return out


def dynamic_filter_layer(points, filters, filter_size, pad=0):
    """JAX/Pallas equivalent of DynamicFilterLayer.forward((points, filters))."""
    # TODO(synk): pad > 0 (zero-padding of the mask axis around a 1x1 conv) not implemented.
    assert pad == 0, "only pad=0 (the module default) is supported"

    points = jnp.asarray(points, jnp.float32)
    filters = jnp.asarray(filters, jnp.float32)
    two_d = points.ndim == 2

    if two_d:
        pts = points[None]            # (1, N, C)
        flt = filters[None]           # (1, P)
    else:
        pts = points                  # (num_inst, n_mask, C)
        flt = filters                 # (num_inst, P)

    num_inst, n, c0 = pts.shape
    fns = tuple(filter_size)

    # One wrapper-side transpose makes the kernel's dominant input lane-dense (N on lanes).
    pts_cn = jnp.transpose(pts, (0, 2, 1))          # (num_inst, C, N)

    params, col_plan, max_rows, total_cols = _pack_params(flt, c0, fns)
    out = dynamic_filter_pallas(pts_cn, params, fns, col_plan, max_rows, total_cols)
    # out: (num_inst, fn_last, n)

    if two_d:
        return out                                   # torch 2-D branch keeps (1, fn_last, N)
    # torch 3-D branch: result of the grouped conv is (1, num_inst*fn_last, n).squeeze()
    return jnp.squeeze(out.reshape(1, num_inst * fns[-1], n))


def _reference(points, filters, filter_size):
    """Pure-JAX reference replicating the torch 3-D branch."""
    pts = jnp.asarray(points, jnp.float32).transpose(0, 2, 1)
    flt = jnp.asarray(filters, jnp.float32)
    num_inst, c_in, n = pts.shape
    h = pts
    off = 0
    for i, fn in enumerate(filter_size):
        w = flt[:, off:off + c_in * fn].reshape(num_inst, fn, c_in)
        off += c_in * fn
        b = flt[:, off:off + fn].reshape(num_inst, fn, 1)
        off += fn
        h = jnp.einsum("ifc,icn->ifn", w, h) + b
        if i < len(filter_size) - 1:
            h = jnp.maximum(h, 0.0)
        c_in = fn
    return jax.nn.sigmoid(jnp.squeeze(h.reshape(1, -1, n)))


if __name__ == "__main__":
    key = jax.random.PRNGKey(0)
    k_pts, k_flt = jax.random.split(key)

    # CondInst-style dynamic mask head: 3 layers of (8, 8, 1) 1x1 convs.
    filter_size = (8, 8, 1)
    num_instances, n_mask, c_in = 4, 256, 8
    n_params = sum(  # per-instance flat parameter count
        c * f + f for c, f in zip((c_in,) + filter_size[:-1], filter_size))  # 153

    points = jax.random.normal(k_pts, (num_instances, n_mask, c_in), jnp.float32)
    filters = 0.1 * jax.random.normal(k_flt, (num_instances, n_params), jnp.float32)

    # 3-D branch
    out = jax.block_until_ready(dynamic_filter_layer(points, filters, filter_size))
    ref = _reference(points, filters, filter_size)
    assert out.shape == ref.shape == (num_instances, n_mask), out.shape
    assert jnp.allclose(out, ref, atol=1e-5, rtol=1e-5), float(jnp.max(jnp.abs(out - ref)))

    # 2-D branch (single flat filter vector): torch keeps the (1, fn_last, N) shape.
    out2 = jax.block_until_ready(dynamic_filter_layer(points[0], filters[0], filter_size))
    ref2 = _reference(points[0][None], filters[0][None], filter_size)   # (n_mask,)
    assert out2.shape == (1, 1, n_mask), out2.shape
    assert jnp.allclose(out2[0, 0], ref2, atol=1e-5, rtol=1e-5)

    # Non-tile-aligned N and num_instances > tile (exercises ragged edge blocks, no jnp.pad).
    ni3, n3 = 5, 200
    pts3 = jax.random.normal(k_pts, (ni3, n3, c_in), jnp.float32)
    flt3 = 0.1 * jax.random.normal(k_flt, (ni3, n_params), jnp.float32)
    out3 = jax.block_until_ready(dynamic_filter_layer(pts3, flt3, filter_size))
    ref3 = _reference(pts3, flt3, filter_size)
    assert out3.shape == ref3.shape == (ni3, n3), out3.shape
    assert jnp.allclose(out3, ref3, atol=1e-5, rtol=1e-5)

    print("KERNEL_OK")
</pallas_src>

<mosaic_0001>
module attributes {stable_mosaic.version = 11 : i64} {
  func.func @kernel(%arg0: i32, %arg1: i32, %arg2: memref<4x8x128xf32, #tpu.memory_space<vmem>>, %arg3: memref<4x8x20xf32, #tpu.memory_space<vmem>>, %arg4: memref<4x128xf32, #tpu.memory_space<vmem>>) attributes {dimension_semantics = [#tpu.dimension_semantics<parallel>, #tpu.dimension_semantics<parallel>], iteration_bounds = array<i64: 1, 2>, scalar_prefetch = 0 : i64, scratch_operands = 0 : i64, tpu.core_type = #tpu.core_type<tc>, window_params = [{transform_indices = @transform_0, window_bounds = array<i64: 4, 8, 128>}, {transform_indices = @transform_1, window_bounds = array<i64: 4, 8, 20>}, {transform_indices = @transform_2, window_bounds = array<i64: 4, 128>}]} {
    %c0 = arith.constant 0 : index
    %c0_0 = arith.constant 0 : index
    %c0_1 = arith.constant 0 : index
    %0 = vector.load %arg2[%c0, %c0_0, %c0_1] : memref<4x8x128xf32, #tpu.memory_space<vmem>>, vector<4x8x128xf32>
    %c0_2 = arith.constant 0 : index
    %c0_3 = arith.constant 0 : index
    %c0_4 = arith.constant 0 : index
    %1 = vector.load %arg3[%c0_2, %c0_3, %c0_4] : memref<4x8x20xf32, #tpu.memory_space<vmem>>, vector<4x8x8xf32>
    %c0_5 = arith.constant 0 : index
    %c0_6 = arith.constant 0 : index
    %c8 = arith.constant 8 : index
    %2 = vector.load %arg3[%c0_5, %c0_6, %c8] : memref<4x8x20xf32, #tpu.memory_space<vmem>>, vector<4x8x1xf32>
    "tpu.trace_start"() <{level = 10 : i32, message = "jfc,jcn->jfn"}> : () -> ()
    %cst = arith.constant dense<0.000000e+00> : vector<4x8x128xf32>
    %3 = tpu.matmul %1, %0, %cst {dimension_numbers = #tpu.dot_dimension_numbers<[2], [1], [1], [2], [0, 0, 0, 1, 1, 2], [0], [0]>} : vector<4x8x8xf32>, vector<4x8x128xf32>, vector<4x8x128xf32> -> vector<4x8x128xf32>
    "tpu.trace_stop"() : () -> ()
    %4 = vector.broadcast %2 : vector<4x8x1xf32> to vector<4x8x128xf32>
    %5 = arith.addf %3, %4 : vector<4x8x128xf32>
    %cst_7 = arith.constant 0.000000e+00 : f32
    %6 = vector.broadcast %cst_7 : f32 to vector<4x8x128xf32>
    %7 = arith.maximumf %5, %6 : vector<4x8x128xf32>
    %c0_8 = arith.constant 0 : index
    %c0_9 = arith.constant 0 : index
    %c9 = arith.constant 9 : index
    %8 = vector.load %arg3[%c0_8, %c0_9, %c9] : memref<4x8x20xf32, #tpu.memory_space<vmem>>, vector<4x8x8xf32>
    %c0_10 = arith.constant 0 : index
    %c0_11 = arith.constant 0 : index
    %c17 = arith.constant 17 : index
    %9 = vector.load %arg3[%c0_10, %c0_11, %c17] : memref<4x8x20xf32, #tpu.memory_space<vmem>>, vector<4x8x1xf32>
    "tpu.trace_start"() <{level = 10 : i32, message = "jfc,jcn->jfn"}> : () -> ()
    %cst_12 = arith.constant dense<0.000000e+00> : vector<4x8x128xf32>
    %10 = tpu.matmul %8, %7, %cst_12 {dimension_numbers = #tpu.dot_dimension_numbers<[2], [1], [1], [2], [0, 0, 0, 1, 1, 2], [0], [0]>} : vector<4x8x8xf32>, vector<4x8x128xf32>, vector<4x8x128xf32> -> vector<4x8x128xf32>
    "tpu.trace_stop"() : () -> ()
    %11 = vector.broadcast %9 : vector<4x8x1xf32> to vector<4x8x128xf32>
    %12 = arith.addf %10, %11 : vector<4x8x128xf32>
    %cst_13 = arith.constant 0.000000e+00 : f32
    %13 = vector.broadcast %cst_13 : f32 to vector<4x8x128xf32>
    %14 = arith.maximumf %12, %13 : vector<4x8x128xf32>
    %c0_14 = arith.constant 0 : index
    %c0_15 = arith.constant 0 : index
    %c18 = arith.constant 18 : index
    %15 = vector.load %arg3[%c0_14, %c0_15, %c18] : memref<4x8x20xf32, #tpu.memory_space<vmem>>, vector<4x8x1xf32>
    %c0_16 = arith.constant 0 : index
    %c0_17 = arith.constant 0 : index
    %c19 = arith.constant 19 : index
    %16 = vector.load %arg3[%c0_16, %c0_17, %c19] : memref<4x8x20xf32, #tpu.memory_space<vmem>>, vector<4x1x1xf32>
    %17 = vector.broadcast %15 : vector<4x8x1xf32> to vector<4x8x128xf32>
    %18 = arith.mulf %17, %14 : vector<4x8x128xf32>
    %cst_18 = arith.constant dense<0.000000e+00> : vector<4x128xf32>
    %19 = vector.multi_reduction <add>, %18, %cst_18 [1] : vector<4x8x128xf32> to vector<4x128xf32>
    %20 = vector.shape_cast %16 : vector<4x1x1xf32> to vector<4x1xf32>
    %21 = vector.broadcast %20 : vector<4x1xf32> to vector<4x128xf32>
    %22 = arith.addf %19, %21 : vector<4x128xf32>
    %23 = arith.negf %22 : vector<4x128xf32>
    %24 = math.exp %23 : vector<4x128xf32>
    %cst_19 = arith.constant 1.000000e+00 : f32
    %25 = vector.broadcast %cst_19 : f32 to vector<4x128xf32>
    %26 = arith.addf %25, %24 : vector<4x128xf32>
    %27 = arith.divf %25, %26 : vector<4x128xf32>
    %c0_20 = arith.constant 0 : index
    %c0_21 = arith.constant 0 : index
    %28 = vector.load %arg4[%c0_20, %c0_21] : memref<4x128xf32, #tpu.memory_space<vmem>>, vector<4x128xf32>
    tpu.vector_store %arg4[%c0_20, %c0_21], %27 {strides = array<i32>} : memref<4x128xf32, #tpu.memory_space<vmem>>, vector<4x128xf32>,
    return
  }
  func.func @transform_0(%arg0: i32, %arg1: i32) -> (i32, i32, i32) {
    %c0_i32 = arith.constant 0 : i32
    %c0_i32_0 = arith.constant 0 : i32
    return %arg0, %c0_i32, %arg1 : i32, i32, i32
  }
  func.func @transform_1(%arg0: i32, %arg1: i32) -> (i32, i32, i32) {
    %c0_i32 = arith.constant 0 : i32
    %c0_i32_0 = arith.constant 0 : i32
    %c0_i32_1 = arith.constant 0 : i32
    return %arg0, %c0_i32, %c0_i32_0 : i32, i32, i32
  }
  func.func @transform_2(%arg0: i32, %arg1: i32) -> (i32, i32) {
    %c0_i32 = arith.constant 0 : i32
    return %arg0, %arg1 : i32, i32
  }
}

</mosaic_0001>

<llo_original>
// kernel: tpu_custom_call.1
$region0: #{tpu_custom_call.1}
  #allocation0 [shape = 'u32[]', space=smem, size = 0x4, offset = 0x4, fixed_abs, tag = 'smem constant byte address 0x4 - core index']
  #allocation1 [shape = 'u32[144,128]{1,0:T(1,128)}', space=vmem, size = 0x12000, scoped, tag = 'internal scratch']
  %s0 = inlined_call_operand.hbm [shape: f32[4,8,256], index: 0, kind: input, shape index: {}]
  %s1 = inlined_call_operand.hbm [shape: f32[4,8,20], index: 1, kind: input, shape index: {}]
  %s2 = inlined_call_operand.hbm [shape: f32[4,256], index: 2, kind: output, shape index: {}]
  %s3 = sld [smem:[#allocation0]]
  $region49: #{tpu_custom_call.1} parent=0
    _
  %s5 = ssub.s32 1, %s3
  %s6 = scalar_select 0, %s5, %s3
  $region1: #{tpu_custom_call.1} parent=0
    #allocation2 [shape = 'u8[32768]{0}', space=vmem, size = 0x8000, scoped, tag = 'input window, operand 0']
    #allocation3 [shape = 's32[2]{0}', space=sflag, size = 0x8, scoped, tag = 'scoped memory for tpu_custom_call.1']
    #allocation4 [shape = 's32[2]{0}', space=sflag, size = 0x8, scoped, tag = 'scoped memory for tpu_custom_call.1']
    #allocation5 [shape = 'u8[16384]{0}', space=vmem, size = 0x4000, scoped, tag = 'input window, operand 1, single buffered']
    #allocation6 [shape = 's32[1]{0}', space=sflag, size = 0x4, scoped, tag = 'scoped memory for tpu_custom_call.1']
    #allocation7 [shape = 'u8[4096]{0}', space=vmem, size = 0x1000, scoped, tag = 'output window, operand 0']
    %7 = vsyncpa [#allocation3], 0
    %s8 = scalar_lea.sflag [#allocation3], 1
    %9 = vsyncpa %s8, 0
    %10 = vsyncpa [#allocation6], 0
    %11 = vsyncpa [#allocation4], 0
    %s12 = scalar_lea.sflag [#allocation4], 1
    %13 = vsyncpa %s12, 0
    loop: start=0, step=1, limit=4
    $region2: #{tpu_custom_call.1} parent=1 // loop_pre_header
      _
    $region3: #{tpu_custom_call.1} parent=1 // loop_header
      %s15 = sphi 0, %s19
      %p16 = scmp.ge.s32.totalorder %s15, 4
      %s22 = sphi 0, %s34
      %s23 = sphi 0, %s30
      %s24 = sphi 0, %s22
      %s25 = sphi 0, %s23
      %s26 = sphi 0, %s24
      %s27 = sphi 0, %s25
      %s39 = sphi 0, %s41
      %s42 = sphi 0, %s39
      %s43 = sphi 0, %s42
      %s59 = sphi 0, %s43
      %s65 = sphi 0, %s67
      %s68 = sphi 0, %s65
      %s69 = sphi 0, %s68
      %s85 = sphi 0, %s69
      %s93 = sphi 0, %s95
      %s96 = sphi 0, %s93
      %s97 = sphi 0, %s96
      %s113 = sphi 0, %s97
    $region4: #{tpu_custom_call.1} parent=1 // loop_header_branch
      %18 = sbr.rel (%p16) target = $region8
    $region5: #{tpu_custom_call.1} parent=1 // loop_body
      %s20 = ssub.s32 %s15, 1
      %s21 = ssub.s32 %s15, 2
      %s28 = sadd.s32 1, %s23
      %p29 = scmp.ge.s32.totalorder %s28, 2
      %s30 = scalar_select %p29, 0, %s28
      %s31 = sadd.s32 1, %s22
      %s32 = scalar_select %p29, %s31, %s22
      %p33 = scmp.ge.s32.totalorder %s32, 1
      %s34 = scalar_select %p33, 0, %s32
      %s35 = ssub.s32 %s22, %s34
      %s36 = ssub.s32 %s23, %s30
      %s37 = sor.u32 %s35, %s36
      %p38 = scmp.eq.s32.totalorder %s37, 0
      %s40 = sadd.s32 %s39, 1
      %s41 = scalar_select %p38, %s39, %s40
      %p44 = pneg %p38
      %p45 = scmp.eq.s32.totalorder %s15, 1
      %p46 = por %p44, %p45
      %p47 = scmp.ne.s32.totalorder %s39, %s42
      %p48 = scmp.eq.s32.totalorder %s15, 0
      %p49 = por %p47, %p48
      %p50 = scmp.ne.s32.totalorder %s39, %s42
      %p51 = scmp.eq.s32.totalorder %s20, 1
      %p52 = por %p50, %p51
      %p53 = scmp.ne.s32.totalorder %s42, %s43
      %p54 = scmp.eq.s32.totalorder %s20, 0
      %p55 = por %p53, %p54
      %p56 = scmp.ne.s32.totalorder %s42, %s43
      %p57 = scmp.eq.s32.totalorder %s21, 1
      %p58 = por %p56, %p57
      %p60 = scmp.ne.s32.totalorder %s43, %s59
      %p61 = scmp.eq.s32.totalorder %s21, 0
      %p62 = por %p60, %p61
      %s63 = ssub.s32 %s22, %s34
      %p64 = scmp.eq.s32.totalorder %s63, 0
      %s66 = sadd.s32 %s65, 1
      %s67 = scalar_select %p64, %s65, %s66
      %p70 = pneg %p64
      %p71 = scmp.eq.s32.totalorder %s15, 1
      %p72 = por %p70, %p71
      %p73 = scmp.ne.s32.totalorder %s65, %s68
      %p74 = scmp.eq.s32.totalorder %s15, 0
      %p75 = por %p73, %p74
      %p76 = scmp.ne.s32.totalorder %s65, %s68
      %p77 = scmp.eq.s32.totalorder %s20, 1
      %p78 = por %p76, %p77
      %p79 = scmp.ne.s32.totalorder %s68, %s69
      %p80 = scmp.eq.s32.totalorder %s20, 0
      %p81 = por %p79, %p80
      %p82 = scmp.ne.s32.totalorder %s68, %s69
      %p83 = scmp.eq.s32.totalorder %s21, 1
      %p84 = por %p82, %p83
      %p86 = scmp.ne.s32.totalorder %s69, %s85
      %p87 = scmp.eq.s32.totalorder %s21, 0
      %p88 = por %p86, %p87
      %s89 = ssub.s32 %s22, %s34
      %s90 = ssub.s32 %s23, %s30
      %s91 = sor.u32 %s89, %s90
      %p92 = scmp.eq.s32.totalorder %s91, 0
      %s94 = sadd.s32 %s93, 1
      %s95 = scalar_select %p92, %s93, %s94
      %p98 = pneg %p92
      %p99 = scmp.eq.s32.totalorder %s15, 1
      %p100 = por %p98, %p99
      %p101 = scmp.ne.s32.totalorder %s93, %s96
      %p102 = scmp.eq.s32.totalorder %s15, 0
      %p103 = por %p101, %p102
      %p104 = scmp.ne.s32.totalorder %s93, %s96
      %p105 = scmp.eq.s32.totalorder %s20, 1
      %p106 = por %p104, %p105
      %p107 = scmp.ne.s32.totalorder %s96, %s97
      %p108 = scmp.eq.s32.totalorder %s20, 0
      %p109 = por %p107, %p108
      %p110 = scmp.ne.s32.totalorder %s96, %s97
      %p111 = scmp.eq.s32.totalorder %s21, 1
      %p112 = por %p110, %p111
      %p114 = scmp.ne.s32.totalorder %s97, %s113
      %p115 = scmp.eq.s32.totalorder %s21, 0
      %p116 = por %p114, %p115
      %p117 = scmp.le.s32.totalorder 1, %s15
      %p118 = scmp.lt.s32.totalorder %s15, 3
      %p119 = pnand %p117, %p118
      %p120 = pneg %p119
      // Predicated region
      $region9: #{tpu_custom_call.1} parent=5 // pred_check
        _
      $region10: #{tpu_custom_call.1} parent=5 // pred_check_branch
        %122 = sbr.rel (%p119) target = $region12
      $region11: #{tpu_custom_call.1} parent=5 // pred_region
        %s123 = ssub.s32 %s15, 1
        // Predicated region
        $region13: #{tpu_custom_call.1} parent=11 // pred_check
          %p124 = pneg %p81
        $region14: #{tpu_custom_call.1} parent=11 // pred_check_branch
          %126 = sbr.rel (%p124) target = $region16
        $region15: #{tpu_custom_call.1} parent=11 // pred_region
          %s127 = smul.u32 4, %s24
          %s129 = ssub.s32 512, 512
          %130 = vsyncadd [#allocation6], %s129
          %s131 = smul.addr %s127, 128
          %s132 = scalar_lea.hbm %s1, %s131
          %s133 = sshll.u32 [#allocation5], 4
          %s134 = int_to_ptr.vmem [resolvable:$true] %s133
          %139 = dma.hbm_to_vmem [thread:$0]  %s132, 512, %s134, [#allocation6], 128, 128, 8
        $region16: #{tpu_custom_call.1} parent=11 // pred_fallthru
          _
      $region12: #{tpu_custom_call.1} parent=5 // pred_fallthru
        _
      %p140 = scmp.lt.s32.totalorder %s15, 2
      // Predicated region
      $region17: #{tpu_custom_call.1} parent=5 // pred_check
        %p141 = pneg %p140
      $region18: #{tpu_custom_call.1} parent=5 // pred_check_branch
        %143 = sbr.rel (%p141) target = $region20
      $region19: #{tpu_custom_call.1} parent=5 // pred_region
        // Predicated region
        $region21: #{tpu_custom_call.1} parent=19 // pred_check
          %p144 = pneg %p49
        $region22: #{tpu_custom_call.1} parent=19 // pred_check_branch
          %146 = sbr.rel (%p144) target = $region24
        $region23: #{tpu_custom_call.1} parent=19 // pred_region
          %s147 = sand.u32 %s39, 1
          %s148 = scalar_lea.sflag [#allocation3], %s147
          %s149 = sand.u32 %s39, 1
          %s150 = smul.addr %s149, 32
          %s151 = scalar_lea.vmem [#allocation2], %s150
          %s152 = smul.u32 4, %s22
          %s154 = ssub.s32 512, 512
          %155 = vsyncadd %s148, %s154
          %s156 = smul.addr %s152, 2
          %s157 = sadd.s32 %s23, %s156
          %s158 = smul.addr %s157, 128
          %s159 = scalar_lea.hbm %s0, %s158
          %s160 = sshll.u32 %s151, 4
          %s161 = int_to_ptr.vmem [resolvable:$true] %s160
          %166 = dma.hbm_to_vmem [thread:$0]  %s159, 512, %s161, %s148, 256, 128, 8
        $region24: #{tpu_custom_call.1} parent=19 // pred_fallthru
          _
      $region20: #{tpu_custom_call.1} parent=5 // pred_fallthru
        _
      %p167 = scmp.le.s32.totalorder 1, %s15
      %p168 = scmp.lt.s32.totalorder %s15, 3
      %p169 = pnand %p167, %p168
      %p170 = pneg %p169
      // Predicated region
      $region25: #{tpu_custom_call.1} parent=5 // pred_check
        _
      $region26: #{tpu_custom_call.1} parent=5 // pred_check_branch
        %172 = sbr.rel (%p169) target = $region28
      $region27: #{tpu_custom_call.1} parent=5 // pred_region
        %s173 = ssub.s32 %s15, 1
        %s174 = sand.u32 %s42, 1
        %s175 = scalar_lea.sflag [#allocation3], %s174
        %s176 = sand.u32 %s42, 1
        %s177 = smul.addr %s176, 32
        %s178 = scalar_lea.vmem [#allocation2], %s177
        // Predicated region
        $region29: #{tpu_custom_call.1} parent=27 // pred_check
          %p179 = pneg %p55
        $region30: #{tpu_custom_call.1} parent=27 // pred_check_branch
          %181 = sbr.rel (%p179) target = $region32
        $region31: #{tpu_custom_call.1} parent=27 // pred_region
          %182 = dma.done %s175, 512
        $region32: #{tpu_custom_call.1} parent=27 // pred_fallthru
          _
        // Predicated region
        $region33: #{tpu_custom_call.1} parent=27 // pred_check
          %p183 = pneg %p81
        $region34: #{tpu_custom_call.1} parent=27 // pred_check_branch
          %185 = sbr.rel (%p183) target = $region36
        $region35: #{tpu_custom_call.1} parent=27 // pred_region
          %186 = dma.done [#allocation6], 512
        $region36: #{tpu_custom_call.1} parent=27 // pred_fallthru
          _
        %s187 = sand.u32 %s42, 1
        %s188 = scalar_lea.sflag [#allocation3], %s187
        %s189 = sand.u32 %s42, 1
        %s190 = smul.addr %s189, 32
        %s191 = scalar_lea.vmem [#allocation2], %s190
        %p192 = pneg %p55
        %p193 = pneg %p52
        %p194 = pneg %p81
        %p195 = pneg %p78
        %p196 = pneg %p109
        %p197 = pneg %p106
        %s198 = sand.u32 %s96, 1
        %s199 = scalar_lea.sflag [#allocation4], %s198
        %s200 = sand.u32 %s96, 1
        %s201 = smul.addr %s200, 4
        %s202 = scalar_lea.vmem [#allocation7], %s201
        %s203 = smul.u32 4, %s24
        %s204 = smul.u32 4, %s24
        %v205 = vld [vmem:[%s178] sm:$0xff]
        %v206 = vld [vmem:[%s178 + $0x8] sm:$0xff]
        %v207 = vld [vmem:[%s178 + $0x10] sm:$0xff]
        %v208 = vld [vmem:[%s178 + $0x18] sm:$0xff]
        %v209 = vld [vmem:[#allocation5] sm:$0xff]
        %v210 = vld [vmem:[#allocation5 + $0x8] sm:$0xff]
        %v211 = vld [vmem:[#allocation5 + $0x10] sm:$0xff]
        %v212 = vld [vmem:[#allocation5 + $0x18] sm:$0xff]
        %214 = vset.pattern.permute.xlu0 8
        %215 = vperm.xlu0 %214, %v209
        %v216 = vpop.permute.xlu0 %215
        %219 = vset.pattern.permute.xlu0 8
        %220 = vperm.xlu0 %219, %v210
        %v221 = vpop.permute.xlu0 %220
        %224 = vset.pattern.permute.xlu0 8
        %225 = vperm.xlu0 %224, %v211
        %v226 = vpop.permute.xlu0 %225
        %229 = vset.pattern.permute.xlu0 8
        %230 = vperm.xlu0 %229, %v212
        %v231 = vpop.permute.xlu0 %230
        %vm233 = vcmask 64512
        %v234 = vsel %vm233, %v209, 0
        %236 = vmatprep.subr.mxu0 0.0
        %237 = vmatpush1.msra.mxu0 %v205
        %238 = vmatprep.subr.mxu0 0.0
        %239 = vmatpush1.msra.mxu0 0.0
        %240 = vmatprep.subr.mxu0 0.0
        %241 = vmatpush1.msra.mxu0 0.0
        %242 = vmatprep.subr.mxu0 0.0
        %243 = vmatpush1.msra.mxu0 0.0
        %244 = vmatprep.subr.mxu0 0.0
        %245 = vmatpush1.msra.mxu0 0.0
        %246 = vmatprep.subr.mxu0 0.0
        %247 = vmatpush1.msra.mxu0 0.0
        %248 = vmatprep.subr.mxu0 0.0
        %249 = vmatpush1.msra.mxu0 0.0
        %250 = vmatprep.subr.mxu0 0.0
        %251 = vmatpush1.msra.mxu0 0.0
        %252 = vmatprep.subr.mxu0 0.0
        %253 = vmatpush1.msra.mxu0 0.0
        %254 = vmatprep.subr.mxu0 0.0
        %255 = vmatpush1.msra.mxu0 0.0
        %256 = vmatprep.subr.mxu0 0.0
        %257 = vmatpush1.msra.mxu0 0.0
        %258 = vmatprep.subr.mxu0 0.0
        %259 = vmatpush1.msra.mxu0 0.0
        %260 = vmatprep.subr.mxu0 0.0
        %261 = vmatpush1.msra.mxu0 0.0
        %262 = vmatprep.subr.mxu0 0.0
        %263 = vmatpush1.msra.mxu0 0.0
        %264 = vmatprep.subr.mxu0 0.0
        %265 = vmatpush1.msra.mxu0 0.0
        %266 = vmatprep.subr.mxu0 0.0
        %267 = vmatpush1.msra.mxu0 0.0
        %268 = vmatprep.subr.mxu0 0.0
        %269 = vmatpush1.msra.mxu0 0.0
        %270 = vmatprep.subr.mxu0 0.0
        %271 = vmatpush1.msra.mxu0 0.0
        %272 = vmatprep.subr.mxu0 0.0
        %273 = vmatpush1.msra.mxu0 0.0
        %274 = vmatprep.subr.mxu0 0.0
        %275 = vmatpush1.msra.mxu0 0.0
        %276 = vmatprep.subr.mxu0 0.0
        %277 = vmatpush1.msra.mxu0 0.0
        %278 = vmatprep.subr.mxu0 0.0
        %279 = vmatpush1.msra.mxu0 0.0
        %280 = vmatprep.subr.mxu0 0.0
        %281 = vmatpush1.msra.mxu0 0.0
        %282 = vmatprep.subr.mxu0 0.0
        %283 = vmatpush1.msra.mxu0 0.0
        %284 = vmatprep.subr.mxu0 0.0
        %285 = vmatpush1.msra.mxu0 0.0
        %286 = vmatprep.subr.mxu0 0.0
        %287 = vmatpush1.msra.mxu0 0.0
        %288 = vmatprep.subr.mxu0 0.0
        %289 = vmatpush1.msra.mxu0 0.0
        %290 = vmatprep.subr.mxu0 0.0
        %291 = vmatpush1.msra.mxu0 0.0
        %292 = vmatprep.subr.mxu0 0.0
        %293 = vmatpush1.msra.mxu0 0.0
        %294 = vmatprep.subr.mxu0 0.0
        %295 = vmatpush1.msra.mxu0 0.0
        %296 = vmatprep.subr.mxu0 0.0
        %297 = vmatpush1.msra.mxu0 0.0
        %298 = vmatprep.subr.mxu0 0.0
        %299 = vmatpush1.msra.mxu0 0.0
        %300 = vmatprep.mubr.f32.mxu0 0.0
        %301 = vmatmul.mubr.f32.gmra.mrb[0].mxu0 %v234
        %v302 = vpop.f32.mrb[0].mxu0
        %v303 = vadd.f32 %v216, %v302
        %v304 = vpop.f32.mrb[0].mxu0
        %305 = vdwg.mxu0
        %v306 = vsel %vm233, %v210, 0
        %308 = vmatprep.subr.mxu0 0.0
        %309 = vmatpush1.msra.mxu0 %v206
        %310 = vmatprep.subr.mxu0 0.0
        %311 = vmatpush1.msra.mxu0 0.0
        %312 = vmatprep.subr.mxu0 0.0
        %313 = vmatpush1.msra.mxu0 0.0
        %314 = vmatprep.subr.mxu0 0.0
        %315 = vmatpush1.msra.mxu0 0.0
        %316 = vmatprep.subr.mxu0 0.0
        %317 = vmatpush1.msra.mxu0 0.0
        %318 = vmatprep.subr.mxu0 0.0
        %319 = vmatpush1.msra.mxu0 0.0
        %320 = vmatprep.subr.mxu0 0.0
        %321 = vmatpush1.msra.mxu0 0.0
        %322 = vmatprep.subr.mxu0 0.0
        %323 = vmatpush1.msra.mxu0 0.0
        %324 = vmatprep.subr.mxu0 0.0
        %325 = vmatpush1.msra.mxu0 0.0
        %326 = vmatprep.subr.mxu0 0.0
        %327 = vmatpush1.msra.mxu0 0.0
        %328 = vmatprep.subr.mxu0 0.0
        %329 = vmatpush1.msra.mxu0 0.0
        %330 = vmatprep.subr.mxu0 0.0
        %331 = vmatpush1.msra.mxu0 0.0
        %332 = vmatprep.subr.mxu0 0.0
        %333 = vmatpush1.msra.mxu0 0.0
        %334 = vmatprep.subr.mxu0 0.0
        %335 = vmatpush1.msra.mxu0 0.0
        %336 = vmatprep.subr.mxu0 0.0
        %337 = vmatpush1.msra.mxu0 0.0
        %338 = vmatprep.subr.mxu0 0.0
        %339 = vmatpush1.msra.mxu0 0.0
        %340 = vmatprep.subr.mxu0 0.0
        %341 = vmatpush1.msra.mxu0 0.0
        %342 = vmatprep.subr.mxu0 0.0
        %343 = vmatpush1.msra.mxu0 0.0
        %344 = vmatprep.subr.mxu0 0.0
        %345 = vmatpush1.msra.mxu0 0.0
        %346 = vmatprep.subr.mxu0 0.0
        %347 = vmatpush1.msra.mxu0 0.0
        %348 = vmatprep.subr.mxu0 0.0
        %349 = vmatpush1.msra.mxu0 0.0
        %350 = vmatprep.subr.mxu0 0.0
        %351 = vmatpush1.msra.mxu0 0.0
        %352 = vmatprep.subr.mxu0 0.0
        %353 = vmatpush1.msra.mxu0 0.0
        %354 = vmatprep.subr.mxu0 0.0
        %355 = vmatpush1.msra.mxu0 0.0
        %356 = vmatprep.subr.mxu0 0.0
        %357 = vmatpush1.msra.mxu0 0.0
        %358 = vmatprep.subr.mxu0 0.0
        %359 = vmatpush1.msra.mxu0 0.0
        %360 = vmatprep.subr.mxu0 0.0
        %361 = vmatpush1.msra.mxu0 0.0
        %362 = vmatprep.subr.mxu0 0.0
        %363 = vmatpush1.msra.mxu0 0.0
        %364 = vmatprep.subr.mxu0 0.0
        %365 = vmatpush1.msra.mxu0 0.0
        %366 = vmatprep.subr.mxu0 0.0
        %367 = vmatpush1.msra.mxu0 0.0
        %368 = vmatprep.subr.mxu0 0.0
        %369 = vmatpush1.msra.mxu0 0.0
        %370 = vmatprep.subr.mxu0 0.0
        %371 = vmatpush1.msra.mxu0 0.0
        %372 = vmatprep.mubr.f32.mxu0 0.0
        %373 = vmatmul.mubr.f32.gmra.mrb[0].mxu0 %v306
        %v374 = vpop.f32.mrb[0].mxu0
        %v375 = vadd.f32 %v221, %v374
        %v376 = vpop.f32.mrb[0].mxu0
        %377 = vdwg.mxu0
        %v378 = vsel %vm233, %v211, 0
        %380 = vmatprep.subr.mxu0 0.0
        %381 = vmatpush1.msra.mxu0 %v207
        %382 = vmatprep.subr.mxu0 0.0
        %383 = vmatpush1.msra.mxu0 0.0
        %384 = vmatprep.subr.mxu0 0.0
        %385 = vmatpush1.msra.mxu0 0.0
        %386 = vmatprep.subr.mxu0 0.0
        %387 = vmatpush1.msra.mxu0 0.0
        %388 = vmatprep.subr.mxu0 0.0
        %389 = vmatpush1.msra.mxu0 0.0
        %390 = vmatprep.subr.mxu0 0.0
        %391 = vmatpush1.msra.mxu0 0.0
        %392 = vmatprep.subr.mxu0 0.0
        %393 = vmatpush1.msra.mxu0 0.0
        %394 = vmatprep.subr.mxu0 0.0
        %395 = vmatpush1.msra.mxu0 0.0
        %396 = vmatprep.subr.mxu0 0.0
        %397 = vmatpush1.msra.mxu0 0.0
        %398 = vmatprep.subr.mxu0 0.0
        %399 = vmatpush1.msra.mxu0 0.0
        %400 = vmatprep.subr.mxu0 0.0
        %401 = vmatpush1.msra.mxu0 0.0
        %402 = vmatprep.subr.mxu0 0.0
        %403 = vmatpush1.msra.mxu0 0.0
        %404 = vmatprep.subr.mxu0 0.0
        %405 = vmatpush1.msra.mxu0 0.0
        %406 = vmatprep.subr.mxu0 0.0
        %407 = vmatpush1.msra.mxu0 0.0
        %408 = vmatprep.subr.mxu0 0.0
        %409 = vmatpush1.msra.mxu0 0.0
        %410 = vmatprep.subr.mxu0 0.0
        %411 = vmatpush1.msra.mxu0 0.0
        %412 = vmatprep.subr.mxu0 0.0
        %413 = vmatpush1.msra.mxu0 0.0
        %414 = vmatprep.subr.mxu0 0.0
        %415 = vmatpush1.msra.mxu0 0.0
        %416 = vmatprep.subr.mxu0 0.0
        %417 = vmatpush1.msra.mxu0 0.0
        %418 = vmatprep.subr.mxu0 0.0
        %419 = vmatpush1.msra.mxu0 0.0
        %420 = vmatprep.subr.mxu0 0.0
        %421 = vmatpush1.msra.mxu0 0.0
        %422 = vmatprep.subr.mxu0 0.0
        %423 = vmatpush1.msra.mxu0 0.0
        %424 = vmatprep.subr.mxu0 0.0
        %425 = vmatpush1.msra.mxu0 0.0
        %426 = vmatprep.subr.mxu0 0.0
        %427 = vmatpush1.msra.mxu0 0.0
        %428 = vmatprep.subr.mxu0 0.0
        %429 = vmatpush1.msra.mxu0 0.0
        %430 = vmatprep.subr.mxu0 0.0
        %431 = vmatpush1.msra.mxu0 0.0
        %432 = vmatprep.subr.mxu0 0.0
        %433 = vmatpush1.msra.mxu0 0.0
        %434 = vmatprep.subr.mxu0 0.0
        %435 = vmatpush1.msra.mxu0 0.0
        %436 = vmatprep.subr.mxu0 0.0
        %437 = vmatpush1.msra.mxu0 0.0
        %438 = vmatprep.subr.mxu0 0.0
        %439 = vmatpush1.msra.mxu0 0.0
        %440 = vmatprep.subr.mxu0 0.0
        %441 = vmatpush1.msra.mxu0 0.0
        %442 = vmatprep.subr.mxu0 0.0
        %443 = vmatpush1.msra.mxu0 0.0
        %444 = vmatprep.mubr.f32.mxu0 0.0
        %445 = vmatmul.mubr.f32.gmra.mrb[0].mxu0 %v378
        %v446 = vpop.f32.mrb[0].mxu0
        %v447 = vadd.f32 %v226, %v446
        %v448 = vpop.f32.mrb[0].mxu0
        %449 = vdwg.mxu0
        %v450 = vsel %vm233, %v212, 0
        %452 = vmatprep.subr.mxu0 0.0
        %453 = vmatpush1.msra.mxu0 %v208
        %454 = vmatprep.subr.mxu0 0.0
        %455 = vmatpush1.msra.mxu0 0.0
        %456 = vmatprep.subr.mxu0 0.0
        %457 = vmatpush1.msra.mxu0 0.0
        %458 = vmatprep.subr.mxu0 0.0
        %459 = vmatpush1.msra.mxu0 0.0
        %460 = vmatprep.subr.mxu0 0.0
        %461 = vmatpush1.msra.mxu0 0.0
        %462 = vmatprep.subr.mxu0 0.0
        %463 = vmatpush1.msra.mxu0 0.0
        %464 = vmatprep.subr.mxu0 0.0
        %465 = vmatpush1.msra.mxu0 0.0
        %466 = vmatprep.subr.mxu0 0.0
        %467 = vmatpush1.msra.mxu0 0.0
        %468 = vmatprep.subr.mxu0 0.0
        %469 = vmatpush1.msra.mxu0 0.0
        %470 = vmatprep.subr.mxu0 0.0
        %471 = vmatpush1.msra.mxu0 0.0
        %472 = vmatprep.subr.mxu0 0.0
        %473 = vmatpush1.msra.mxu0 0.0
        %474 = vmatprep.subr.mxu0 0.0
        %475 = vmatpush1.msra.mxu0 0.0
        %476 = vmatprep.subr.mxu0 0.0
        %477 = vmatpush1.msra.mxu0 0.0
        %478 = vmatprep.subr.mxu0 0.0
        %479 = vmatpush1.msra.mxu0 0.0
        %480 = vmatprep.subr.mxu0 0.0
        %481 = vmatpush1.msra.mxu0 0.0
        %482 = vmatprep.subr.mxu0 0.0
        %483 = vmatpush1.msra.mxu0 0.0
        %484 = vmatprep.subr.mxu0 0.0
        %485 = vmatpush1.msra.mxu0 0.0
        %486 = vmatprep.subr.mxu0 0.0
        %487 = vmatpush1.msra.mxu0 0.0
        %488 = vmatprep.subr.mxu0 0.0
        %489 = vmatpush1.msra.mxu0 0.0
        %490 = vmatprep.subr.mxu0 0.0
        %491 = vmatpush1.msra.mxu0 0.0
        %492 = vmatprep.subr.mxu0 0.0
        %493 = vmatpush1.msra.mxu0 0.0
        %494 = vmatprep.subr.mxu0 0.0
        %495 = vmatpush1.msra.mxu0 0.0
        %496 = vmatprep.subr.mxu0 0.0
        %497 = vmatpush1.msra.mxu0 0.0
        %498 = vmatprep.subr.mxu0 0.0
        %499 = vmatpush1.msra.mxu0 0.0
        %500 = vmatprep.subr.mxu0 0.0
        %501 = vmatpush1.msra.mxu0 0.0
        %502 = vmatprep.subr.mxu0 0.0
        %503 = vmatpush1.msra.mxu0 0.0
        %504 = vmatprep.subr.mxu0 0.0
        %505 = vmatpush1.msra.mxu0 0.0
        %506 = vmatprep.subr.mxu0 0.0
        %507 = vmatpush1.msra.mxu0 0.0
        %508 = vmatprep.subr.mxu0 0.0
        %509 = vmatpush1.msra.mxu0 0.0
        %510 = vmatprep.subr.mxu0 0.0
        %511 = vmatpush1.msra.mxu0 0.0
        %512 = vmatprep.subr.mxu0 0.0
        %513 = vmatpush1.msra.mxu0 0.0
        %514 = vmatprep.subr.mxu0 0.0
        %515 = vmatpush1.msra.mxu0 0.0
        %516 = vmatprep.mubr.f32.mxu0 0.0
        %517 = vmatmul.mubr.f32.gmra.mrb[0].mxu0 %v450
        %v518 = vpop.f32.mrb[0].mxu0
        %v519 = vadd.f32 %v231, %v518
        %v520 = vpop.f32.mrb[0].mxu0
        %521 = vdwg.mxu0
        %v522 = vmax.f32 %v303, 0.0
        %v523 = vmax.f32 %v375, 0.0
        %v524 = vmax.f32 %v447, 0.0
        %v525 = vmax.f32 %v519, 0.0
        %v526 = vld [vmem:[#allocation5] sm:$0xff]
        %v527 = vld [vmem:[#allocation5 + $0x8] sm:$0xff]
        %v528 = vld [vmem:[#allocation5 + $0x10] sm:$0xff]
        %v529 = vld [vmem:[#allocation5 + $0x18] sm:$0xff]
        %531 = vset.pattern.permute.xlu0 17
        %532 = vperm.xlu0 %531, %v526
        %v533 = vpop.permute.xlu0 %532
        %536 = vset.pattern.permute.xlu0 17
        %537 = vperm.xlu0 %536, %v527
        %v538 = vpop.permute.xlu0 %537
        %541 = vset.pattern.permute.xlu0 17
        %542 = vperm.xlu0 %541, %v528
        %v543 = vpop.permute.xlu0 %542
        %546 = vset.pattern.permute.xlu0 17
        %547 = vperm.xlu0 %546, %v529
        %v548 = vpop.permute.xlu0 %547
        %550 = vrot.lane.b32.xlu0 %v526, 119
        %v551 = vpop.permute.xlu0 %550
        %v552 = vsel %vm233, %v551, 0
        %554 = vmatprep.subr.mxu0 0.0
        %555 = vmatpush1.msra.mxu0 %v522
        %556 = vmatprep.subr.mxu0 0.0
        %557 = vmatpush1.msra.mxu0 0.0
        %558 = vmatprep.subr.mxu0 0.0
        %559 = vmatpush1.msra.mxu0 0.0
        %560 = vmatprep.subr.mxu0 0.0
        %561 = vmatpush1.msra.mxu0 0.0
        %562 = vmatprep.subr.mxu0 0.0
        %563 = vmatpush1.msra.mxu0 0.0
        %564 = vmatprep.subr.mxu0 0.0
        %565 = vmatpush1.msra.mxu0 0.0
        %566 = vmatprep.subr.mxu0 0.0
        %567 = vmatpush1.msra.mxu0 0.0
        %568 = vmatprep.subr.mxu0 0.0
        %569 = vmatpush1.msra.mxu0 0.0
        %570 = vmatprep.subr.mxu0 0.0
        %571 = vmatpush1.msra.mxu0 0.0
        %572 = vmatprep.subr.mxu0 0.0
        %573 = vmatpush1.msra.mxu0 0.0
        %574 = vmatprep.subr.mxu0 0.0
        %575 = vmatpush1.msra.mxu0 0.0
        %576 = vmatprep.subr.mxu0 0.0
        %577 = vmatpush1.msra.mxu0 0.0
        %578 = vmatprep.subr.mxu0 0.0
        %579 = vmatpush1.msra.mxu0 0.0
        %580 = vmatprep.subr.mxu0 0.0
        %581 = vmatpush1.msra.mxu0 0.0
        %582 = vmatprep.subr.mxu0 0.0
        %583 = vmatpush1.msra.mxu0 0.0
        %584 = vmatprep.subr.mxu0 0.0
        %585 = vmatpush1.msra.mxu0 0.0
        %586 = vmatprep.subr.mxu0 0.0
        %587 = vmatpush1.msra.mxu0 0.0
        %588 = vmatprep.subr.mxu0 0.0
        %589 = vmatpush1.msra.mxu0 0.0
        %590 = vmatprep.subr.mxu0 0.0
        %591 = vmatpush1.msra.mxu0 0.0
        %592 = vmatprep.subr.mxu0 0.0
        %593 = vmatpush1.msra.mxu0 0.0
        %594 = vmatprep.subr.mxu0 0.0
        %595 = vmatpush1.msra.mxu0 0.0
        %596 = vmatprep.subr.mxu0 0.0
        %597 = vmatpush1.msra.mxu0 0.0
        %598 = vmatprep.subr.mxu0 0.0
        %599 = vmatpush1.msra.mxu0 0.0
        %600 = vmatprep.subr.mxu0 0.0
        %601 = vmatpush1.msra.mxu0 0.0
        %602 = vmatprep.subr.mxu0 0.0
        %603 = vmatpush1.msra.mxu0 0.0
        %604 = vmatprep.subr.mxu0 0.0
        %605 = vmatpush1.msra.mxu0 0.0
        %606 = vmatprep.subr.mxu0 0.0
        %607 = vmatpush1.msra.mxu0 0.0
        %608 = vmatprep.subr.mxu0 0.0
        %609 = vmatpush1.msra.mxu0 0.0
        %610 = vmatprep.subr.mxu0 0.0
        %611 = vmatpush1.msra.mxu0 0.0
        %612 = vmatprep.subr.mxu0 0.0
        %613 = vmatpush1.msra.mxu0 0.0
        %614 = vmatprep.subr.mxu0 0.0
        %615 = vmatpush1.msra.mxu0 0.0
        %616 = vmatprep.subr.mxu0 0.0
        %617 = vmatpush1.msra.mxu0 0.0
        %618 = vmatprep.mubr.f32.mxu0 0.0
        %619 = vmatmul.mubr.f32.gmra.mrb[0].mxu0 %v552
        %v620 = vpop.f32.mrb[0].mxu0
        %v621 = vadd.f32 %v533, %v620
        %v622 = vpop.f32.mrb[0].mxu0
        %623 = vdwg.mxu0
        %624 = vrot.lane.b32.xlu0 %v527, 119
        %v625 = vpop.permute.xlu0 %624
        %v626 = vsel %vm233, %v625, 0
        %628 = vmatprep.subr.mxu0 0.0
        %629 = vmatpush1.msra.mxu0 %v523
        %630 = vmatprep.subr.mxu0 0.0
        %631 = vmatpush1.msra.mxu0 0.0
        %632 = vmatprep.subr.mxu0 0.0
        %633 = vmatpush1.msra.mxu0 0.0
        %634 = vmatprep.subr.mxu0 0.0
        %635 = vmatpush1.msra.mxu0 0.0
        %636 = vmatprep.subr.mxu0 0.0
        %637 = vmatpush1.msra.mxu0 0.0
        %638 = vmatprep.subr.mxu0 0.0
        %639 = vmatpush1.msra.mxu0 0.0
        %640 = vmatprep.subr.mxu0 0.0
        %641 = vmatpush1.msra.mxu0 0.0
        %642 = vmatprep.subr.mxu0 0.0
        %643 = vmatpush1.msra.mxu0 0.0
        %644 = vmatprep.subr.mxu0 0.0
        %645 = vmatpush1.msra.mxu0 0.0
        %646 = vmatprep.subr.mxu0 0.0
        %647 = vmatpush1.msra.mxu0 0.0
        %648 = vmatprep.subr.mxu0 0.0
        %649 = vmatpush1.msra.mxu0 0.0
        %650 = vmatprep.subr.mxu0 0.0
        %651 = vmatpush1.msra.mxu0 0.0
        %652 = vmatprep.subr.mxu0 0.0
        %653 = vmatpush1.msra.mxu0 0.0
        %654 = vmatprep.subr.mxu0 0.0
        %655 = vmatpush1.msra.mxu0 0.0
        %656 = vmatprep.subr.mxu0 0.0
        %657 = vmatpush1.msra.mxu0 0.0
        %658 = vmatprep.subr.mxu0 0.0
        %659 = vmatpush1.msra.mxu0 0.0
        %660 = vmatprep.subr.mxu0 0.0
        %661 = vmatpush1.msra.mxu0 0.0
        %662 = vmatprep.subr.mxu0 0.0
        %663 = vmatpush1.msra.mxu0 0.0
        %664 = vmatprep.subr.mxu0 0.0
        %665 = vmatpush1.msra.mxu0 0.0
        %666 = vmatprep.subr.mxu0 0.0
        %667 = vmatpush1.msra.mxu0 0.0
        %668 = vmatprep.subr.mxu0 0.0
        %669 = vmatpush1.msra.mxu0 0.0
        %670 = vmatprep.subr.mxu0 0.0
        %671 = vmatpush1.msra.mxu0 0.0
        %672 = vmatprep.subr.mxu0 0.0
        %673 = vmatpush1.msra.mxu0 0.0
        %674 = vmatprep.subr.mxu0 0.0
        %675 = vmatpush1.msra.mxu0 0.0
        %676 = vmatprep.subr.mxu0 0.0
        %677 = vmatpush1.msra.mxu0 0.0
        %678 = vmatprep.subr.mxu0 0.0
        %679 = vmatpush1.msra.mxu0 0.0
        %680 = vmatprep.subr.mxu0 0.0
        %681 = vmatpush1.msra.mxu0 0.0
        %682 = vmatprep.subr.mxu0 0.0
        %683 = vmatpush1.msra.mxu0 0.0
        %684 = vmatprep.subr.mxu0 0.0
        %685 = vmatpush1.msra.mxu0 0.0
        %686 = vmatprep.subr.mxu0 0.0
        %687 = vmatpush1.msra.mxu0 0.0
        %688 = vmatprep.subr.mxu0 0.0
        %689 = vmatpush1.msra.mxu0 0.0
        %690 = vmatprep.subr.mxu0 0.0
        %691 = vmatpush1.msra.mxu0 0.0
        %692 = vmatprep.mubr.f32.mxu0 0.0
        %693 = vmatmul.mubr.f32.gmra.mrb[0].mxu0 %v626
        %v694 = vpop.f32.mrb[0].mxu0
        %v695 = vadd.f32 %v538, %v694
        %v696 = vpop.f32.mrb[0].mxu0
        %697 = vdwg.mxu0
        %698 = vrot.lane.b32.xlu0 %v528, 119
        %v699 = vpop.permute.xlu0 %698
        %v700 = vsel %vm233, %v699, 0
        %702 = vmatprep.subr.mxu0 0.0
        %703 = vmatpush1.msra.mxu0 %v524
        %704 = vmatprep.subr.mxu0 0.0
        %705 = vmatpush1.msra.mxu0 0.0
        %706 = vmatprep.subr.mxu0 0.0
        %707 = vmatpush1.msra.mxu0 0.0
        %708 = vmatprep.subr.mxu0 0.0
        %709 = vmatpush1.msra.mxu0 0.0
        %710 = vmatprep.subr.mxu0 0.0
        %711 = vmatpush1.msra.mxu0 0.0
        %712 = vmatprep.subr.mxu0 0.0
        %713 = vmatpush1.msra.mxu0 0.0
        %714 = vmatprep.subr.mxu0 0.0
        %715 = vmatpush1.msra.mxu0 0.0
        %716 = vmatprep.subr.mxu0 0.0
        %717 = vmatpush1.msra.mxu0 0.0
        %718 = vmatprep.subr.mxu0 0.0
        %719 = vmatpush1.msra.mxu0 0.0
        %720 = vmatprep.subr.mxu0 0.0
        %721 = vmatpush1.msra.mxu0 0.0
        %722 = vmatprep.subr.mxu0 0.0
        %723 = vmatpush1.msra.mxu0 0.0
        %724 = vmatprep.subr.mxu0 0.0
        %725 = vmatpush1.msra.mxu0 0.0
        %726 = vmatprep.subr.mxu0 0.0
        %727 = vmatpush1.msra.mxu0 0.0
        %728 = vmatprep.subr.mxu0 0.0
        %729 = vmatpush1.msra.mxu0 0.0
        %730 = vmatprep.subr.mxu0 0.0
        %731 = vmatpush1.msra.mxu0 0.0
        %732 = vmatprep.subr.mxu0 0.0
        %733 = vmatpush1.msra.mxu0 0.0
        %734 = vmatprep.subr.mxu0 0.0
        %735 = vmatpush1.msra.mxu0 0.0
        %736 = vmatprep.subr.mxu0 0.0
        %737 = vmatpush1.msra.mxu0 0.0
        %738 = vmatprep.subr.mxu0 0.0
        %739 = vmatpush1.msra.mxu0 0.0
        %740 = vmatprep.subr.mxu0 0.0
        %741 = vmatpush1.msra.mxu0 0.0
        %742 = vmatprep.subr.mxu0 0.0
        %743 = vmatpush1.msra.mxu0 0.0
        %744 = vmatprep.subr.mxu0 0.0
        %745 = vmatpush1.msra.mxu0 0.0
        %746 = vmatprep.subr.mxu0 0.0
        %747 = vmatpush1.msra.mxu0 0.0
        %748 = vmatprep.subr.mxu0 0.0
        %749 = vmatpush1.msra.mxu0 0.0
        %750 = vmatprep.subr.mxu0 0.0
        %751 = vmatpush1.msra.mxu0 0.0
        %752 = vmatprep.subr.mxu0 0.0
        %753 = vmatpush1.msra.mxu0 0.0
        %754 = vmatprep.subr.mxu0 0.0
        %755 = vmatpush1.msra.mxu0 0.0
        %756 = vmatprep.subr.mxu0 0.0
        %757 = vmatpush1.msra.mxu0 0.0
        %758 = vmatprep.subr.mxu0 0.0
        %759 = vmatpush1.msra.mxu0 0.0
        %760 = vmatprep.subr.mxu0 0.0
        %761 = vmatpush1.msra.mxu0 0.0
        %762 = vmatprep.subr.mxu0 0.0
        %763 = vmatpush1.msra.mxu0 0.0
        %764 = vmatprep.subr.mxu0 0.0
        %765 = vmatpush1.msra.mxu0 0.0
        %766 = vmatprep.mubr.f32.mxu0 0.0
        %767 = vmatmul.mubr.f32.gmra.mrb[0].mxu0 %v700
        %v768 = vpop.f32.mrb[0].mxu0
        %v769 = vadd.f32 %v543, %v768
        %v770 = vpop.f32.mrb[0].mxu0
        %771 = vdwg.mxu0
        %772 = vrot.lane.b32.xlu0 %v529, 119
        %v773 = vpop.permute.xlu0 %772
        %v774 = vsel %vm233, %v773, 0
        %776 = vmatprep.subr.mxu0 0.0
        %777 = vmatpush1.msra.mxu0 %v525
        %778 = vmatprep.subr.mxu0 0.0
        %779 = vmatpush1.msra.mxu0 0.0
        %780 = vmatprep.subr.mxu0 0.0
        %781 = vmatpush1.msra.mxu0 0.0
        %782 = vmatprep.subr.mxu0 0.0
        %783 = vmatpush1.msra.mxu0 0.0
        %784 = vmatprep.subr.mxu0 0.0
        %785 = vmatpush1.msra.mxu0 0.0
        %786 = vmatprep.subr.mxu0 0.0
        %787 = vmatpush1.msra.mxu0 0.0
        %788 = vmatprep.subr.mxu0 0.0
        %789 = vmatpush1.msra.mxu0 0.0
        %790 = vmatprep.subr.mxu0 0.0
        %791 = vmatpush1.msra.mxu0 0.0
        %792 = vmatprep.subr.mxu0 0.0
        %793 = vmatpush1.msra.mxu0 0.0
        %794 = vmatprep.subr.mxu0 0.0
        %795 = vmatpush1.msra.mxu0 0.0
        %796 = vmatprep.subr.mxu0 0.0
        %797 = vmatpush1.msra.mxu0 0.0
        %798 = vmatprep.subr.mxu0 0.0
        %799 = vmatpush1.msra.mxu0 0.0
        %800 = vmatprep.subr.mxu0 0.0
        %801 = vmatpush1.msra.mxu0 0.0
        %802 = vmatprep.subr.mxu0 0.0
        %803 = vmatpush1.msra.mxu0 0.0
        %804 = vmatprep.subr.mxu0 0.0
        %805 = vmatpush1.msra.mxu0 0.0
        %806 = vmatprep.subr.mxu0 0.0
        %807 = vmatpush1.msra.mxu0 0.0
        %808 = vmatprep.subr.mxu0 0.0
        %809 = vmatpush1.msra.mxu0 0.0
        %810 = vmatprep.subr.mxu0 0.0
        %811 = vmatpush1.msra.mxu0 0.0
        %812 = vmatprep.subr.mxu0 0.0
        %813 = vmatpush1.msra.mxu0 0.0
        %814 = vmatprep.subr.mxu0 0.0
        %815 = vmatpush1.msra.mxu0 0.0
        %816 = vmatprep.subr.mxu0 0.0
        %817 = vmatpush1.msra.mxu0 0.0
        %818 = vmatprep.subr.mxu0 0.0
        %819 = vmatpush1.msra.mxu0 0.0
        %820 = vmatprep.subr.mxu0 0.0
        %821 = vmatpush1.msra.mxu0 0.0
        %822 = vmatprep.subr.mxu0 0.0
        %823 = vmatpush1.msra.mxu0 0.0
        %824 = vmatprep.subr.mxu0 0.0
        %825 = vmatpush1.msra.mxu0 0.0
        %826 = vmatprep.subr.mxu0 0.0
        %827 = vmatpush1.msra.mxu0 0.0
        %828 = vmatprep.subr.mxu0 0.0
        %829 = vmatpush1.msra.mxu0 0.0
        %830 = vmatprep.subr.mxu0 0.0
        %831 = vmatpush1.msra.mxu0 0.0
        %832 = vmatprep.subr.mxu0 0.0
        %833 = vmatpush1.msra.mxu0 0.0
        %834 = vmatprep.subr.mxu0 0.0
        %835 = vmatpush1.msra.mxu0 0.0
        %836 = vmatprep.subr.mxu0 0.0
        %837 = vmatpush1.msra.mxu0 0.0
        %838 = vmatprep.subr.mxu0 0.0
        %839 = vmatpush1.msra.mxu0 0.0
        %840 = vmatprep.mubr.f32.mxu0 0.0
        %841 = vmatmul.mubr.f32.gmra.mrb[0].mxu0 %v774
        %v842 = vpop.f32.mrb[0].mxu0
        %v843 = vadd.f32 %v548, %v842
        %v844 = vpop.f32.mrb[0].mxu0
        %845 = vdwg.mxu0
        %v846 = vmax.f32 %v621, 0.0
        %v847 = vmax.f32 %v695, 0.0
        %v848 = vmax.f32 %v769, 0.0
        %v849 = vmax.f32 %v843, 0.0
        %v850 = vld [vmem:[#allocation5] sm:$0xff]
        %v851 = vld [vmem:[#allocation5 + $0x8] sm:$0xff]
        %v852 = vld [vmem:[#allocation5 + $0x10] sm:$0xff]
        %v853 = vld [vmem:[#allocation5 + $0x18] sm:$0xff]
        %v854 = vld [vmem:[#allocation5] sm:$0x1]
        %v855 = vld [vmem:[#allocation5 + $0x8] sm:$0x1]
        %v856 = vld [vmem:[#allocation5 + $0x10] sm:$0x1]
        %v857 = vld [vmem:[#allocation5 + $0x18] sm:$0x1]
        %859 = vset.pattern.permute.xlu0 18
        %860 = vperm.xlu0 %859, %v850
        %v861 = vpop.permute.xlu0 %860
        %864 = vset.pattern.permute.xlu0 18
        %865 = vperm.xlu0 %864, %v851
        %v866 = vpop.permute.xlu0 %865
        %869 = vset.pattern.permute.xlu0 18
        %870 = vperm.xlu0 %869, %v852
        %v871 = vpop.permute.xlu0 %870
        %874 = vset.pattern.permute.xlu0 18
        %875 = vperm.xlu0 %874, %v853
        %v876 = vpop.permute.xlu0 %875
        %v878 = vmul.f32 %v861, %v846
        %v879 = vmul.f32 %v866, %v847
        %v880 = vmul.f32 %v871, %v848
        %v881 = vmul.f32 %v876, %v849
        %v882 = vrot.slane %v878, 4
        %v883 = vadd.f32 %v878, %v882
        %v884 = vrot.slane %v883, 2
        %v885 = vadd.f32 %v883, %v884
        %v886 = vrot.slane %v885, 1
        %v887 = vadd.f32 %v885, %v886
        %v888 = vrot.slane %v879, 4
        %v889 = vadd.f32 %v879, %v888
        %v890 = vrot.slane %v889, 2
        %v891 = vadd.f32 %v889, %v890
        %v892 = vrot.slane %v891, 1
        %v893 = vadd.f32 %v891, %v892
        %v894 = vrot.slane %v880, 4
        %v895 = vadd.f32 %v880, %v894
        %v896 = vrot.slane %v895, 2
        %v897 = vadd.f32 %v895, %v896
        %v898 = vrot.slane %v897, 1
        %v899 = vadd.f32 %v897, %v898
        %v900 = vrot.slane %v881, 4
        %v901 = vadd.f32 %v881, %v900
        %v902 = vrot.slane %v901, 2
        %v903 = vadd.f32 %v901, %v902
        %v904 = vrot.slane %v903, 1
        %v905 = vadd.f32 %v903, %v904
        %907 = vset.pattern.permute.xlu0 19
        %908 = vperm.xlu0 %907, %v854
        %v909 = vpop.permute.xlu0 %908
        %912 = vset.pattern.permute.xlu0 19
        %913 = vperm.xlu0 %912, %v855
        %v914 = vpop.permute.xlu0 %913
        %917 = vset.pattern.permute.xlu0 19
        %918 = vperm.xlu0 %917, %v856
        %v919 = vpop.permute.xlu0 %918
        %922 = vset.pattern.permute.xlu0 19
        %923 = vperm.xlu0 %922, %v857
        %v924 = vpop.permute.xlu0 %923
        %v926 = vadd.f32 %v887, %v909
        %v927 = vadd.f32 %v893, %v914
        %v928 = vadd.f32 %v899, %v919
        %v929 = vadd.f32 %v905, %v924
        %v930 = vxor.u32 %v926, 2147483648
        %v931 = vxor.u32 %v927, 2147483648
        %v932 = vxor.u32 %v928, 2147483648
        %v933 = vxor.u32 %v929, 2147483648
        %v934 = vmul.f32 %v930, 1.442695
        %v935 = vpow.pop %v934
        %v936 = vmul.f32 %v931, 1.442695
        %v937 = vpow.pop %v936
        %v938 = vmul.f32 %v932, 1.442695
        %v939 = vpow.pop %v938
        %v940 = vmul.f32 %v933, 1.442695
        %v941 = vpow.pop %v940
        %v942 = vadd.f32 %v935, 1.0
        %v943 = vadd.f32 %v937, 1.0
        %v944 = vadd.f32 %v939, 1.0
        %v945 = vadd.f32 %v941, 1.0
        %v946 = vrcp.pop %v942
        %v947 = vmul.f32 1.0, %v946
        %v948 = vrcp.pop %v943
        %v949 = vmul.f32 1.0, %v948
        %v950 = vrcp.pop %v944
        %v951 = vmul.f32 1.0, %v950
        %v952 = vrcp.pop %v945
        %v953 = vmul.f32 1.0, %v952
        %v958 = vrot.slane %v949, 7
        %vm959 = vcmask 1041409
        %v960 = vsel %vm959, %v958, %v947
        %v961 = vrot.slane %v951, 6
        %vm962 = vcmask 1042434
        %v963 = vsel %vm962, %v961, %v960
        %v964 = vrot.slane %v953, 5
        %vm965 = vcmask 1043459
        %v966 = vsel %vm965, %v964, %v963
        %968 = vst [vmem:[%s202] sm:$0xf] %v966
        %s969 = sand.u32 %s96, 1
        %s970 = scalar_lea.sflag [#allocation4], %s969
        %s971 = sand.u32 %s96, 1
        %s972 = smul.addr %s971, 4
        %s973 = scalar_lea.vmem [#allocation7], %s972
        // Predicated region
        $region37: #{tpu_custom_call.1} parent=27 // pred_check
          %p974 = pneg %p106
        $region38: #{tpu_custom_call.1} parent=27 // pred_check_branch
          %976 = sbr.rel (%p974) target = $region40
        $region39: #{tpu_custom_call.1} parent=27 // pred_region
          %s978 = ssub.s32 64, 64
          %979 = vsyncadd %s970, %s978
          %s980 = smul.addr %s24, 2
          %s981 = sadd.s32 %s25, %s980
          %s982 = smul.addr %s981, 64
          %s983 = scalar_lea.hbm %s2, %s982
          %s985 = sshll.u32 %s973, 4
          %s986 = int_to_ptr.vmem [resolvable:$true] %s985
          %988 = dma.vmem_to_hbm [thread:$0]  %s986, 64, %s983, %s970
        $region40: #{tpu_custom_call.1} parent=27 // pred_fallthru
          _
      $region28: #{tpu_custom_call.1} parent=5 // pred_fallthru
        _
      %p989 = scmp.le.s32.totalorder 2, %s15
      // Predicated region
      $region41: #{tpu_custom_call.1} parent=5 // pred_check
        %p990 = pneg %p989
      $region42: #{tpu_custom_call.1} parent=5 // pred_check_branch
        %992 = sbr.rel (%p990) target = $region44
      $region43: #{tpu_custom_call.1} parent=5 // pred_region
        %s993 = ssub.s32 %s15, 2
        // Predicated region
        $region45: #{tpu_custom_call.1} parent=43 // pred_check
          %p994 = pneg %p112
        $region46: #{tpu_custom_call.1} parent=43 // pred_check_branch
          %996 = sbr.rel (%p994) target = $region48
        $region47: #{tpu_custom_call.1} parent=43 // pred_region
          %s997 = sand.u32 %s97, 1
          %s998 = scalar_lea.sflag [#allocation4], %s997
          %s999 = sand.u32 %s97, 1
          %s1000 = smul.addr %s999, 4
          %s1001 = scalar_lea.vmem [#allocation7], %s1000
          %1002 = dma.done %s998, 64
        $region48: #{tpu_custom_call.1} parent=43 // pred_fallthru
          _
      $region44: #{tpu_custom_call.1} parent=5 // pred_fallthru
        _
    $region6: #{tpu_custom_call.1} parent=1 // loop_footer
      %s19 = sadd.s32 1, %s15
    $region7: #{tpu_custom_call.1} parent=1 // loop_footer_branch
      %14 = sbr.rel target = $region3
    $region8: #{tpu_custom_call.1} parent=1 // loop_exit
      _
    %1003 = vsyncpa [#allocation3], 1
    %s1004 = scalar_lea.sflag [#allocation3], 1
    %1005 = vsyncpa %s1004, 1
    %1006 = vsyncpa [#allocation6], 1
    %1007 = vsyncpa [#allocation4], 1
    %s1008 = scalar_lea.sflag [#allocation4], 1
    %1009 = vsyncpa %s1008, 1

</llo_original>
